<compile_context>
chip_gen: v7x
topology: tpu7x:2x2x1
jax: 0.10.0
libtpu: 0.0.40
codegen_flags: <defaults>
</compile_context>

<pallas_src>
import jax
import jax.numpy as jnp
from jax.experimental import pallas as pl
from jax.experimental.pallas import tpu as pltpu


def _upsample_conv1x1_kernel(x_ref, a_ref, w_ref, b_ref, o_ref):
    """Fused (bilinear-upsample over D,H) + (1x1x1 conv) + bias, one batch elem.

    x_ref: (1, Din*Hin, W*Cin)   natural NDHWC flattening of one batch element
    a_ref: (Dout*Hout, Din*Hin)  kron(A_d, A_h) interpolation matrix
    w_ref: (W*Cin, W*Cout)       block-diagonal 1x1x1 conv weight kron(I_W, Wc)
    b_ref: (1, W*Cout)           bias tiled over W
    o_ref: (1, Dout*Hout, W*Cout)
    """
    up = jnp.dot(a_ref[...], x_ref[0], preferred_element_type=jnp.float32)
    o_ref[0] = jnp.dot(up, w_ref[...],
                       preferred_element_type=jnp.float32) + b_ref[...]


def _interp_matrix(size, scale):
    """(scale*size, size) linear-interp matrix, PyTorch align_corners=False."""
    o = jnp.arange(scale * size, dtype=jnp.float32)
    src = jnp.maximum((o + 0.5) / scale - 0.5, 0.0)
    i0 = jnp.floor(src).astype(jnp.int32)
    i1 = jnp.minimum(i0 + 1, size - 1)
    l1 = src - i0.astype(jnp.float32)
    l0 = 1.0 - l1
    rows = jnp.arange(scale * size)
    mat = jnp.zeros((scale * size, size), jnp.float32)
    mat = mat.at[rows, i0].add(l0)
    mat = mat.at[rows, i1].add(l1)          # i0 == i1 at edges -> weights sum to 1
    return mat


def upconv_forward(x_ncdhw, w=None, b=None, scale=2):
    """UpConvBlock forward (deconv=False).

    x_ncdhw: (N, Cin, D, H, W) float32
    w:       (Cin, Cout) 1x1x1 conv weight or None (identity, Cin == Cout)
    b:       (Cout,) bias or None
    """
    N, Cin, Din, Hin, Wsp = x_ncdhw.shape
    Cout = Cin if w is None else w.shape[1]
    Dout, Hout = scale * Din, scale * Hin

    # NCDHW -> NDHWC, then the free row-major collapse to lane-dense 3D.
    x2 = jnp.transpose(x_ncdhw, (0, 2, 3, 4, 1)).reshape(N, Din * Hin, Wsp * Cin)

    # Combined (D, H) interpolation matrix.
    a_mat = jnp.kron(_interp_matrix(Din, scale), _interp_matrix(Hin, scale))

    # Block-diagonal channel-mix weight and tiled bias.
    if w is None:
        w = jnp.eye(Cin, dtype=jnp.float32)
        b = jnp.zeros((Cin,), jnp.float32)
    w_big = jnp.kron(jnp.eye(Wsp, dtype=jnp.float32), w.astype(jnp.float32))
    b_big = jnp.tile(b.astype(jnp.float32), Wsp).reshape(1, Wsp * Cout)

    out2 = pl.pallas_call(
        _upsample_conv1x1_kernel,
        out_shape=jax.ShapeDtypeStruct((N, Dout * Hout, Wsp * Cout), jnp.float32),
        grid_spec=pltpu.PrefetchScalarGridSpec(
            num_scalar_prefetch=0,
            grid=(N,),
            in_specs=[
                pl.BlockSpec((1, Din * Hin, Wsp * Cin), lambda n: (n, 0, 0)),
                pl.BlockSpec((Dout * Hout, Din * Hin), lambda n: (0, 0)),
                pl.BlockSpec((Wsp * Cin, Wsp * Cout), lambda n: (0, 0)),
                pl.BlockSpec((1, Wsp * Cout), lambda n: (0, 0)),
            ],
            out_specs=pl.BlockSpec((1, Dout * Hout, Wsp * Cout),
                                   lambda n: (n, 0, 0)),
        ),
        compiler_params=pltpu.CompilerParams(
            dimension_semantics=("parallel",),      # no carry -> megacore OK
            vmem_limit_bytes=32 * 1024 * 1024),
    )(x2, a_mat, w_big, b_big)

    out = out2.reshape(N, Dout, Hout, Wsp, Cout)     # free row-major split
    return jnp.transpose(out, (0, 4, 1, 2, 3))       # NDHWC -> NCDHW


class UpConvBlockPallas:
    """Pallas equivalent of PyTorch UpConvBlock (deconv=False)."""

    def __init__(self, in_channel, out_channel, scale=2, deconv=False, key=None):
        if deconv:
            # TODO(synk): deconv=True (ConvTranspose3d) path not implemented.
            raise NotImplementedError("deconv=True path not implemented")
        self.scale = scale
        if in_channel != out_channel:
            kw, kb = jax.random.split(key)
            self.w = 0.1 * jax.random.normal(kw, (in_channel, out_channel),
                                             jnp.float32)
            self.b = 0.1 * jax.random.normal(kb, (out_channel,), jnp.float32)
        else:
            self.w, self.b = None, None

    def __call__(self, x_ncdhw):
        return upconv_forward(x_ncdhw, self.w, self.b, self.scale)


# ----------------------------- pure-JAX reference -----------------------------

def _upsample_1d_ref(t, axis, scale):
    size = t.shape[axis]
    o = jnp.arange(scale * size, dtype=jnp.float32)
    src = jnp.maximum((o + 0.5) / scale - 0.5, 0.0)
    i0 = jnp.floor(src).astype(jnp.int32)
    i1 = jnp.minimum(i0 + 1, size - 1)
    l1 = src - i0.astype(jnp.float32)
    l0 = 1.0 - l1
    g0 = jnp.take(t, i0, axis=axis)
    g1 = jnp.take(t, i1, axis=axis)
    shp = [1] * t.ndim
    shp[axis] = scale * size
    return g0 * l0.reshape(shp) + g1 * l1.reshape(shp)


def _reference(x_ncdhw, w, b, scale=2):
    """Matches PyTorch: trilinear upsample (scale, scale, 1), align_corners=False,
    then 1x1x1 Conv3d (if w is not None)."""
    y = _upsample_1d_ref(x_ncdhw, axis=2, scale=scale)   # D
    y = _upsample_1d_ref(y, axis=3, scale=scale)         # H (W axis: scale 1 = identity)
    if w is not None:
        y = jnp.einsum("ncdhw,co->nodhw", y, w,
                       precision=jax.lax.Precision.HIGHEST)
        y = y + b[None, :, None, None, None]
    return y


if __name__ == "__main__":
    key = jax.random.PRNGKey(0)
    k_x, k_p = jax.random.split(key)

    N, Cin, Cout, D, H, W = 2, 4, 8, 8, 8, 8
    scale = 2
    x = jax.random.normal(k_x, (N, Cin, D, H, W), jnp.float32)   # NCDHW

    block = UpConvBlockPallas(Cin, Cout, scale=scale, deconv=False, key=k_p)
    out = jax.block_until_ready(block(x))

    assert out.shape == (N, Cout, scale * D, scale * H, W), out.shape
    ref = _reference(x, block.w, block.b, scale)
    err = float(jnp.max(jnp.abs(out - ref)))
    assert jnp.allclose(out, ref, atol=1e-3, rtol=1e-3), err
    print("KERNEL_OK")
</pallas_src>

<mosaic_0001>
module attributes {stable_mosaic.version = 11 : i64} {
  func.func @_upsample_conv1x1_kernel(%arg0: i32, %arg1: memref<1x64x32xf32, #tpu.memory_space<vmem>>, %arg2: memref<256x64xf32, #tpu.memory_space<vmem>>, %arg3: memref<32x64xf32, #tpu.memory_space<vmem>>, %arg4: memref<1x64xf32, #tpu.memory_space<vmem>>, %arg5: memref<1x256x64xf32, #tpu.memory_space<vmem>>) attributes {dimension_semantics = [#tpu.dimension_semantics<parallel>], iteration_bounds = array<i64: 2>, scalar_prefetch = 0 : i64, scratch_operands = 0 : i64, tpu.core_type = #tpu.core_type<tc>, window_params = [{transform_indices = @transform_0, window_bounds = array<i64: 1, 64, 32>}, {pipeline_mode = #tpu.pipeline_mode<synchronous>, transform_indices = @transform_1, window_bounds = array<i64: 256, 64>}, {pipeline_mode = #tpu.pipeline_mode<synchronous>, transform_indices = @transform_2, window_bounds = array<i64: 32, 64>}, {pipeline_mode = #tpu.pipeline_mode<synchronous>, transform_indices = @transform_3, window_bounds = array<i64: 1, 64>}, {transform_indices = @transform_4, window_bounds = array<i64: 1, 256, 64>}]} {
    %c0 = arith.constant 0 : index
    %c0_0 = arith.constant 0 : index
    %0 = vector.load %arg2[%c0, %c0_0] : memref<256x64xf32, #tpu.memory_space<vmem>>, vector<256x64xf32>
    %c0_1 = arith.constant 0 : index
    %c0_2 = arith.constant 0 : index
    %c0_3 = arith.constant 0 : index
    %1 = vector.load %arg1[%c0_1, %c0_2, %c0_3] : memref<1x64x32xf32, #tpu.memory_space<vmem>>, vector<1x64x32xf32>
    %2 = vector.shape_cast %1 : vector<1x64x32xf32> to vector<64x32xf32>
    %cst = arith.constant dense<0.000000e+00> : vector<256x32xf32>
    %3 = tpu.matmul %0, %2, %cst {dimension_numbers = #tpu.dot_dimension_numbers<[1], [0], [0], [1], [0, 0, 1, 1], [], []>} : vector<256x64xf32>, vector<64x32xf32>, vector<256x32xf32> -> vector<256x32xf32>
    %c0_4 = arith.constant 0 : index
    %c0_5 = arith.constant 0 : index
    %4 = vector.load %arg3[%c0_4, %c0_5] : memref<32x64xf32, #tpu.memory_space<vmem>>, vector<32x64xf32>
    %cst_6 = arith.constant dense<0.000000e+00> : vector<256x64xf32>
    %5 = tpu.matmul %3, %4, %cst_6 {dimension_numbers = #tpu.dot_dimension_numbers<[1], [0], [0], [1], [0, 0, 1, 1], [], []>} : vector<256x32xf32>, vector<32x64xf32>, vector<256x64xf32> -> vector<256x64xf32>
    %c0_7 = arith.constant 0 : index
    %c0_8 = arith.constant 0 : index
    %6 = vector.load %arg4[%c0_7, %c0_8] : memref<1x64xf32, #tpu.memory_space<vmem>>, vector<1x64xf32>
    %7 = vector.broadcast %6 : vector<1x64xf32> to vector<256x64xf32>
    %8 = arith.addf %5, %7 : vector<256x64xf32>
    %c0_9 = arith.constant 0 : index
    %c0_10 = arith.constant 0 : index
    %c0_11 = arith.constant 0 : index
    %9 = vector.load %arg5[%c0_9, %c0_10, %c0_11] : memref<1x256x64xf32, #tpu.memory_space<vmem>>, vector<1x256x64xf32>
    %10 = vector.shape_cast %9 : vector<1x256x64xf32> to vector<256x64xf32>
    %11 = vector.shape_cast %8 : vector<256x64xf32> to vector<1x256x64xf32>
    tpu.vector_store %arg5[%c0_9, %c0_10, %c0_11], %11 {strides = array<i32>} : memref<1x256x64xf32, #tpu.memory_space<vmem>>, vector<1x256x64xf32>,
    return
  }
  func.func @transform_0(%arg0: i32) -> (i32, i32, i32) {
    %c0_i32 = arith.constant 0 : i32
    %c0_i32_0 = arith.constant 0 : i32
    %c0_i32_1 = arith.constant 0 : i32
    return %arg0, %c0_i32, %c0_i32_0 : i32, i32, i32
  }
  func.func @transform_1(%arg0: i32) -> (i32, i32) {
    %c0_i32 = arith.constant 0 : i32
    %c0_i32_0 = arith.constant 0 : i32
    %c0_i32_1 = arith.constant 0 : i32
    return %c0_i32, %c0_i32_0 : i32, i32
  }
  func.func @transform_2(%arg0: i32) -> (i32, i32) {
    %c0_i32 = arith.constant 0 : i32
    %c0_i32_0 = arith.constant 0 : i32
    %c0_i32_1 = arith.constant 0 : i32
    return %c0_i32, %c0_i32_0 : i32, i32
  }
  func.func @transform_3(%arg0: i32) -> (i32, i32) {
    %c0_i32 = arith.constant 0 : i32
    %c0_i32_0 = arith.constant 0 : i32
    %c0_i32_1 = arith.constant 0 : i32
    return %c0_i32, %c0_i32_0 : i32, i32
  }
  func.func @transform_4(%arg0: i32) -> (i32, i32, i32) {
    %c0_i32 = arith.constant 0 : i32
    %c0_i32_0 = arith.constant 0 : i32
    %c0_i32_1 = arith.constant 0 : i32
    return %arg0, %c0_i32, %c0_i32_0 : i32, i32, i32
  }
}

</mosaic_0001>

<llo_original>
// kernel: tpu_custom_call.1
$region0: #{tpu_custom_call.1}
  #allocation0 [shape = 'u32[]', space=smem, size = 0x4, offset = 0x4, fixed_abs, tag = 'smem constant byte address 0x4 - core index']
  #allocation1 [shape = 'u32[144,128]{1,0:T(1,128)}', space=vmem, size = 0x12000, scoped, tag = 'internal scratch']
  %s0 = inlined_call_operand.vmem [shape: f32[2,64,32], index: 0, kind: input, shape index: {}]
  %s1 = inlined_call_operand.vmem [shape: f32[256,64], index: 1, kind: input, shape index: {}]
  %s2 = inlined_call_operand.vmem [shape: f32[32,64], index: 2, kind: input, shape index: {}]
  %s3 = inlined_call_operand.vmem [shape: f32[1,64], index: 3, kind: input, shape index: {}]
  %s4 = inlined_call_operand.vmem [shape: f32[2,256,64], index: 4, kind: output, shape index: {}]
  %s5 = sld [smem:[#allocation0]]
  $region49: #{tpu_custom_call.1} parent=0
    _
  %s7 = ssub.s32 1, %s5
  %s8 = scalar_select 0, %s7, %s5
  loop: start=0, step=1, limit=4
  $region2: #{tpu_custom_call.1} parent=0 // loop_pre_header
    _
  $region3: #{tpu_custom_call.1} parent=0 // loop_header
    %s10 = sphi 0, %s14
    %p11 = scmp.ge.s32.totalorder %s10, 4
    %s20 = sphi 0, %s22
    %s23 = sphi 0, %s20
    %s24 = sphi 0, %s23
    %s40 = sphi 0, %s24
    %s44 = sphi 0, %s44
    %s46 = sphi 0, %s44
    %s47 = sphi 0, %s46
    %s61 = sphi 0, %s47
    %s65 = sphi 0, %s65
    %s67 = sphi 0, %s65
    %s68 = sphi 0, %s67
    %s82 = sphi 0, %s68
    %s86 = sphi 0, %s86
    %s88 = sphi 0, %s86
    %s89 = sphi 0, %s88
    %s103 = sphi 0, %s89
    %s109 = sphi 0, %s111
    %s112 = sphi 0, %s109
    %s113 = sphi 0, %s112
    %s129 = sphi 0, %s113
  $region4: #{tpu_custom_call.1} parent=0 // loop_header_branch
    %13 = sbr.rel (%p11) target = $region8
  $region5: #{tpu_custom_call.1} parent=0 // loop_body
    %s15 = ssub.s32 %s10, 1
    %s16 = ssub.s32 %s10, 2
    %s17 = sadd.s32 %s10, 1
    %s18 = ssub.s32 %s10, %s17
    %p19 = scmp.eq.s32.totalorder %s18, 0
    %s21 = sadd.s32 %s20, 1
    %s22 = scalar_select %p19, %s20, %s21
    %p25 = pneg %p19
    %p26 = scmp.eq.s32.totalorder %s10, 1
    %p27 = por %p25, %p26
    %p28 = scmp.ne.s32.totalorder %s20, %s23
    %p29 = scmp.eq.s32.totalorder %s10, 0
    %p30 = por %p28, %p29
    %p31 = scmp.ne.s32.totalorder %s20, %s23
    %p32 = scmp.eq.s32.totalorder %s15, 1
    %p33 = por %p31, %p32
    %p34 = scmp.ne.s32.totalorder %s23, %s24
    %p35 = scmp.eq.s32.totalorder %s15, 0
    %p36 = por %p34, %p35
    %p37 = scmp.ne.s32.totalorder %s23, %s24
    %p38 = scmp.eq.s32.totalorder %s16, 1
    %p39 = por %p37, %p38
    %p41 = scmp.ne.s32.totalorder %s24, %s40
    %p42 = scmp.eq.s32.totalorder %s16, 0
    %p43 = por %p41, %p42
    %s45 = sadd.s32 %s44, 1
    %p48 = scmp.eq.s32.totalorder %s10, 1
    %p49 = scmp.ne.s32.totalorder %s44, %s46
    %p50 = scmp.eq.s32.totalorder %s10, 0
    %p51 = por %p49, %p50
    %p52 = scmp.ne.s32.totalorder %s44, %s46
    %p53 = scmp.eq.s32.totalorder %s15, 1
    %p54 = por %p52, %p53
    %p55 = scmp.ne.s32.totalorder %s46, %s47
    %p56 = scmp.eq.s32.totalorder %s15, 0
    %p57 = por %p55, %p56
    %p58 = scmp.ne.s32.totalorder %s46, %s47
    %p59 = scmp.eq.s32.totalorder %s16, 1
    %p60 = por %p58, %p59
    %p62 = scmp.ne.s32.totalorder %s47, %s61
    %p63 = scmp.eq.s32.totalorder %s16, 0
    %p64 = por %p62, %p63
    %s66 = sadd.s32 %s65, 1
    %p69 = scmp.eq.s32.totalorder %s10, 1
    %p70 = scmp.ne.s32.totalorder %s65, %s67
    %p71 = scmp.eq.s32.totalorder %s10, 0
    %p72 = por %p70, %p71
    %p73 = scmp.ne.s32.totalorder %s65, %s67
    %p74 = scmp.eq.s32.totalorder %s15, 1
    %p75 = por %p73, %p74
    %p76 = scmp.ne.s32.totalorder %s67, %s68
    %p77 = scmp.eq.s32.totalorder %s15, 0
    %p78 = por %p76, %p77
    %p79 = scmp.ne.s32.totalorder %s67, %s68
    %p80 = scmp.eq.s32.totalorder %s16, 1
    %p81 = por %p79, %p80
    %p83 = scmp.ne.s32.totalorder %s68, %s82
    %p84 = scmp.eq.s32.totalorder %s16, 0
    %p85 = por %p83, %p84
    %s87 = sadd.s32 %s86, 1
    %p90 = scmp.eq.s32.totalorder %s10, 1
    %p91 = scmp.ne.s32.totalorder %s86, %s88
    %p92 = scmp.eq.s32.totalorder %s10, 0
    %p93 = por %p91, %p92
    %p94 = scmp.ne.s32.totalorder %s86, %s88
    %p95 = scmp.eq.s32.totalorder %s15, 1
    %p96 = por %p94, %p95
    %p97 = scmp.ne.s32.totalorder %s88, %s89
    %p98 = scmp.eq.s32.totalorder %s15, 0
    %p99 = por %p97, %p98
    %p100 = scmp.ne.s32.totalorder %s88, %s89
    %p101 = scmp.eq.s32.totalorder %s16, 1
    %p102 = por %p100, %p101
    %p104 = scmp.ne.s32.totalorder %s89, %s103
    %p105 = scmp.eq.s32.totalorder %s16, 0
    %p106 = por %p104, %p105
    %s107 = ssub.s32 %s10, %s17
    %p108 = scmp.eq.s32.totalorder %s107, 0
    %s110 = sadd.s32 %s109, 1
    %s111 = scalar_select %p108, %s109, %s110
    %p114 = pneg %p108
    %p115 = scmp.eq.s32.totalorder %s10, 1
    %p116 = por %p114, %p115
    %p117 = scmp.ne.s32.totalorder %s109, %s112
    %p118 = scmp.eq.s32.totalorder %s10, 0
    %p119 = por %p117, %p118
    %p120 = scmp.ne.s32.totalorder %s109, %s112
    %p121 = scmp.eq.s32.totalorder %s15, 1
    %p122 = por %p120, %p121
    %p123 = scmp.ne.s32.totalorder %s112, %s113
    %p124 = scmp.eq.s32.totalorder %s15, 0
    %p125 = por %p123, %p124
    %p126 = scmp.ne.s32.totalorder %s112, %s113
    %p127 = scmp.eq.s32.totalorder %s16, 1
    %p128 = por %p126, %p127
    %p130 = scmp.ne.s32.totalorder %s113, %s129
    %p131 = scmp.eq.s32.totalorder %s16, 0
    %p132 = por %p130, %p131
    %p133 = scmp.le.s32.totalorder 1, %s10
    %p134 = scmp.lt.s32.totalorder %s10, 3
    %p135 = pnand %p133, %p134
    %p136 = pneg %p135
    // Predicated region
    $region9: #{tpu_custom_call.1} parent=5 // pred_check
      _
    $region10: #{tpu_custom_call.1} parent=5 // pred_check_branch
      %138 = sbr.rel (%p135) target = $region12
    $region11: #{tpu_custom_call.1} parent=5 // pred_region
      %s139 = ssub.s32 %s10, 1
      // Predicated region
      $region13: #{tpu_custom_call.1} parent=11 // pred_check
        %p140 = pneg %p57
      $region14: #{tpu_custom_call.1} parent=11 // pred_check_branch
        %142 = sbr.rel (%p140) target = $region16
      $region15: #{tpu_custom_call.1} parent=11 // pred_region
        _
      $region16: #{tpu_custom_call.1} parent=11 // pred_fallthru
        _
      // Predicated region
      $region17: #{tpu_custom_call.1} parent=11 // pred_check
        %p143 = pneg %p78
      $region18: #{tpu_custom_call.1} parent=11 // pred_check_branch
        %145 = sbr.rel (%p143) target = $region20
      $region19: #{tpu_custom_call.1} parent=11 // pred_region
        _
      $region20: #{tpu_custom_call.1} parent=11 // pred_fallthru
        _
      // Predicated region
      $region21: #{tpu_custom_call.1} parent=11 // pred_check
        %p146 = pneg %p99
      $region22: #{tpu_custom_call.1} parent=11 // pred_check_branch
        %148 = sbr.rel (%p146) target = $region24
      $region23: #{tpu_custom_call.1} parent=11 // pred_region
        _
      $region24: #{tpu_custom_call.1} parent=11 // pred_fallthru
        _
    $region12: #{tpu_custom_call.1} parent=5 // pred_fallthru
      _
    %p149 = scmp.lt.s32.totalorder %s10, 2
    // Predicated region
    $region25: #{tpu_custom_call.1} parent=5 // pred_check
      %p150 = pneg %p149
    $region26: #{tpu_custom_call.1} parent=5 // pred_check_branch
      %152 = sbr.rel (%p150) target = $region28
    $region27: #{tpu_custom_call.1} parent=5 // pred_region
      // Predicated region
      $region29: #{tpu_custom_call.1} parent=27 // pred_check
        %p153 = pneg %p30
      $region30: #{tpu_custom_call.1} parent=27 // pred_check_branch
        %155 = sbr.rel (%p153) target = $region32
      $region31: #{tpu_custom_call.1} parent=27 // pred_region
        %p156 = scmp.lt.s32.totalorder %s10, 1
        %s157 = scalar_select %p156, %s10, 1
        %s158 = smul.addr %s157, 8
        %s159 = smul.addr %s158, 8
        %s160 = scalar_lea.vmem %s0, %s159
      $region32: #{tpu_custom_call.1} parent=27 // pred_fallthru
        _
    $region28: #{tpu_custom_call.1} parent=5 // pred_fallthru
      _
    %p161 = scmp.le.s32.totalorder 1, %s10
    %p162 = scmp.lt.s32.totalorder %s10, 3
    %p163 = pnand %p161, %p162
    %p164 = pneg %p163
    // Predicated region
    $region33: #{tpu_custom_call.1} parent=5 // pred_check
      _
    $region34: #{tpu_custom_call.1} parent=5 // pred_check_branch
      %166 = sbr.rel (%p163) target = $region36
    $region35: #{tpu_custom_call.1} parent=5 // pred_region
      %s167 = ssub.s32 %s10, 1
      %p168 = scmp.lt.s32.totalorder %s15, 1
      %s169 = scalar_select %p168, %s15, 1
      %s170 = smul.addr %s169, 8
      %s171 = smul.addr %s170, 8
      %s172 = scalar_lea.vmem %s0, %s171
      %p173 = pneg %p36
      %p174 = pneg %p33
      %p175 = pneg %p57
      %p176 = pneg %p54
      %p177 = pneg %p78
      %p178 = pneg %p75
      %p179 = pneg %p99
      %p180 = pneg %p96
      %p181 = pneg %p125
      %p182 = pneg %p122
      %p183 = scmp.lt.s32.totalorder %s15, 1
      %s184 = scalar_select %p183, %s15, 1
      %s185 = smul.addr %s184, 32
      %s186 = smul.addr %s185, 8
      %s187 = scalar_lea.vmem %s4, %s186
      %p188 = scmp.lt.s32.totalorder %s15, 1
      %s189 = scalar_select %p188, %s15, 1
      %s190 = smul.addr %s189, 8
      %s191 = smul.addr %s190, 8
      %s192 = scalar_lea.vmem %s0, %s191
      %p193 = scmp.lt.s32.totalorder %s15, 1
      %s194 = scalar_select %p193, %s15, 1
      %s195 = smul.addr %s194, 32
      %s196 = smul.addr %s195, 8
      %s197 = scalar_lea.vmem %s4, %s196
      %v198 = vld [vmem:[%s1] sm:$0xff]
      %v199 = vld [vmem:[%s1 + $0x8] sm:$0xff]
      %v200 = vld [vmem:[%s1 + $0x10] sm:$0xff]
      %v201 = vld [vmem:[%s1 + $0x18] sm:$0xff]
      %v202 = vld [vmem:[%s1 + $0x20] sm:$0xff]
      %v203 = vld [vmem:[%s1 + $0x28] sm:$0xff]
      %v204 = vld [vmem:[%s1 + $0x30] sm:$0xff]
      %v205 = vld [vmem:[%s1 + $0x38] sm:$0xff]
      %v206 = vld [vmem:[%s1 + $0x40] sm:$0xff]
      %v207 = vld [vmem:[%s1 + $0x48] sm:$0xff]
      %v208 = vld [vmem:[%s1 + $0x50] sm:$0xff]
      %v209 = vld [vmem:[%s1 + $0x58] sm:$0xff]
      %v210 = vld [vmem:[%s1 + $0x60] sm:$0xff]
      %v211 = vld [vmem:[%s1 + $0x68] sm:$0xff]
      %v212 = vld [vmem:[%s1 + $0x70] sm:$0xff]
      %v213 = vld [vmem:[%s1 + $0x78] sm:$0xff]
      %v214 = vld [vmem:[%s1 + $0x80] sm:$0xff]
      %v215 = vld [vmem:[%s1 + $0x88] sm:$0xff]
      %v216 = vld [vmem:[%s1 + $0x90] sm:$0xff]
      %v217 = vld [vmem:[%s1 + $0x98] sm:$0xff]
      %v218 = vld [vmem:[%s1 + $0xa0] sm:$0xff]
      %v219 = vld [vmem:[%s1 + $0xa8] sm:$0xff]
      %v220 = vld [vmem:[%s1 + $0xb0] sm:$0xff]
      %v221 = vld [vmem:[%s1 + $0xb8] sm:$0xff]
      %v222 = vld [vmem:[%s1 + $0xc0] sm:$0xff]
      %v223 = vld [vmem:[%s1 + $0xc8] sm:$0xff]
      %v224 = vld [vmem:[%s1 + $0xd0] sm:$0xff]
      %v225 = vld [vmem:[%s1 + $0xd8] sm:$0xff]
      %v226 = vld [vmem:[%s1 + $0xe0] sm:$0xff]
      %v227 = vld [vmem:[%s1 + $0xe8] sm:$0xff]
      %v228 = vld [vmem:[%s1 + $0xf0] sm:$0xff]
      %v229 = vld [vmem:[%s1 + $0xf8] sm:$0xff]
      %v230 = vld [vmem:[%s192] sm:$0xff]
      %v231 = vld [vmem:[%s192 + $0x8] sm:$0xff]
      %v232 = vld [vmem:[%s192 + $0x10] sm:$0xff]
      %v233 = vld [vmem:[%s192 + $0x18] sm:$0xff]
      %v234 = vld [vmem:[%s192 + $0x20] sm:$0xff]
      %v235 = vld [vmem:[%s192 + $0x28] sm:$0xff]
      %v236 = vld [vmem:[%s192 + $0x30] sm:$0xff]
      %v237 = vld [vmem:[%s192 + $0x38] sm:$0xff]
      %vm238 = vcmask 523264
      %v240 = vsel %vm238, %v198, 0
      %v243 = vsel %vm238, %v199, 0
      %v246 = vsel %vm238, %v200, 0
      %v249 = vsel %vm238, %v201, 0
      %v252 = vsel %vm238, %v202, 0
      %v255 = vsel %vm238, %v203, 0
      %v258 = vsel %vm238, %v204, 0
      %v261 = vsel %vm238, %v205, 0
      %v264 = vsel %vm238, %v206, 0
      %v267 = vsel %vm238, %v207, 0
      %v270 = vsel %vm238, %v208, 0
      %v273 = vsel %vm238, %v209, 0
      %v276 = vsel %vm238, %v210, 0
      %v279 = vsel %vm238, %v211, 0
      %v282 = vsel %vm238, %v212, 0
      %v285 = vsel %vm238, %v213, 0
      %v288 = vsel %vm238, %v214, 0
      %v291 = vsel %vm238, %v215, 0
      %v294 = vsel %vm238, %v216, 0
      %v297 = vsel %vm238, %v217, 0
      %v300 = vsel %vm238, %v218, 0
      %v303 = vsel %vm238, %v219, 0
      %v306 = vsel %vm238, %v220, 0
      %v309 = vsel %vm238, %v221, 0
      %v312 = vsel %vm238, %v222, 0
      %v315 = vsel %vm238, %v223, 0
      %v318 = vsel %vm238, %v224, 0
      %v321 = vsel %vm238, %v225, 0
      %v324 = vsel %vm238, %v226, 0
      %v327 = vsel %vm238, %v227, 0
      %v330 = vsel %vm238, %v228, 0
      %v333 = vsel %vm238, %v229, 0
      %335 = vmatprep.subr.mxu0 0.0
      %336 = vmatpush1.msra.mxu0 %v230
      %337 = vmatprep.subr.mxu0 0.0
      %338 = vmatpush1.msra.mxu0 %v231
      %339 = vmatprep.subr.mxu0 0.0
      %340 = vmatpush1.msra.mxu0 %v232
      %341 = vmatprep.subr.mxu0 0.0
      %342 = vmatpush1.msra.mxu0 %v233
      %343 = vmatprep.subr.mxu0 0.0
      %344 = vmatpush1.msra.mxu0 %v234
      %345 = vmatprep.subr.mxu0 0.0
      %346 = vmatpush1.msra.mxu0 %v235
      %347 = vmatprep.subr.mxu0 0.0
      %348 = vmatpush1.msra.mxu0 %v236
      %349 = vmatprep.subr.mxu0 0.0
      %350 = vmatpush1.msra.mxu0 %v237
      %351 = vmatprep.subr.mxu0 0.0
      %352 = vmatpush1.msra.mxu0 0.0
      %353 = vmatprep.subr.mxu0 0.0
      %354 = vmatpush1.msra.mxu0 0.0
      %355 = vmatprep.subr.mxu0 0.0
      %356 = vmatpush1.msra.mxu0 0.0
      %357 = vmatprep.subr.mxu0 0.0
      %358 = vmatpush1.msra.mxu0 0.0
      %359 = vmatprep.subr.mxu0 0.0
      %360 = vmatpush1.msra.mxu0 0.0
      %361 = vmatprep.subr.mxu0 0.0
      %362 = vmatpush1.msra.mxu0 0.0
      %363 = vmatprep.subr.mxu0 0.0
      %364 = vmatpush1.msra.mxu0 0.0
      %365 = vmatprep.subr.mxu0 0.0
      %366 = vmatpush1.msra.mxu0 0.0
      %367 = vmatprep.subr.mxu0 0.0
      %368 = vmatpush1.msra.mxu0 0.0
      %369 = vmatprep.subr.mxu0 0.0
      %370 = vmatpush1.msra.mxu0 0.0
      %371 = vmatprep.subr.mxu0 0.0
      %372 = vmatpush1.msra.mxu0 0.0
      %373 = vmatprep.subr.mxu0 0.0
      %374 = vmatpush1.msra.mxu0 0.0
      %375 = vmatprep.subr.mxu0 0.0
      %376 = vmatpush1.msra.mxu0 0.0
      %377 = vmatprep.subr.mxu0 0.0
      %378 = vmatpush1.msra.mxu0 0.0
      %379 = vmatprep.subr.mxu0 0.0
      %380 = vmatpush1.msra.mxu0 0.0
      %381 = vmatprep.subr.mxu0 0.0
      %382 = vmatpush1.msra.mxu0 0.0
      %383 = vmatprep.subr.mxu0 0.0
      %384 = vmatpush1.msra.mxu0 0.0
      %385 = vmatprep.subr.mxu0 0.0
      %386 = vmatpush1.msra.mxu0 0.0
      %387 = vmatprep.subr.mxu0 0.0
      %388 = vmatpush1.msra.mxu0 0.0
      %389 = vmatprep.subr.mxu0 0.0
      %390 = vmatpush1.msra.mxu0 0.0
      %391 = vmatprep.subr.mxu0 0.0
      %392 = vmatpush1.msra.mxu0 0.0
      %393 = vmatprep.subr.mxu0 0.0
      %394 = vmatpush1.msra.mxu0 0.0
      %395 = vmatprep.subr.mxu0 0.0
      %396 = vmatpush1.msra.mxu0 0.0
      %397 = vmatprep.subr.mxu0 0.0
      %398 = vmatpush1.msra.mxu0 0.0
      %399 = vmatprep.mubr.f32.mxu0 0.0
      %400 = vmatmul.mubr.f32.gmra.mrb[0].mxu0 %v240
      %v401 = vpop.f32.mrb[0].mxu0
      %v402 = vadd.f32 0.0, %v401
      %v403 = vpop.f32.mrb[0].mxu0
      %404 = vmatprep.mubr.f32.mxu0 0.0
      %405 = vmatmul.mubr.f32.gmra.mrb[0].mxu0 %v243
      %v406 = vpop.f32.mrb[0].mxu0
      %v407 = vadd.f32 0.0, %v406
      %v408 = vpop.f32.mrb[0].mxu0
      %409 = vmatprep.mubr.f32.mxu0 0.0
      %410 = vmatmul.mubr.f32.gmra.mrb[0].mxu0 %v246
      %v411 = vpop.f32.mrb[0].mxu0
      %v412 = vadd.f32 0.0, %v411
      %v413 = vpop.f32.mrb[0].mxu0
      %414 = vmatprep.mubr.f32.mxu0 0.0
      %415 = vmatmul.mubr.f32.gmra.mrb[0].mxu0 %v249
      %v416 = vpop.f32.mrb[0].mxu0
      %v417 = vadd.f32 0.0, %v416
      %v418 = vpop.f32.mrb[0].mxu0
      %419 = vmatprep.mubr.f32.mxu0 0.0
      %420 = vmatmul.mubr.f32.gmra.mrb[0].mxu0 %v252
      %v421 = vpop.f32.mrb[0].mxu0
      %v422 = vadd.f32 0.0, %v421
      %v423 = vpop.f32.mrb[0].mxu0
      %424 = vmatprep.mubr.f32.mxu0 0.0
      %425 = vmatmul.mubr.f32.gmra.mrb[0].mxu0 %v255
      %v426 = vpop.f32.mrb[0].mxu0
      %v427 = vadd.f32 0.0, %v426
      %v428 = vpop.f32.mrb[0].mxu0
      %429 = vmatprep.mubr.f32.mxu0 0.0
      %430 = vmatmul.mubr.f32.gmra.mrb[0].mxu0 %v258
      %v431 = vpop.f32.mrb[0].mxu0
      %v432 = vadd.f32 0.0, %v431
      %v433 = vpop.f32.mrb[0].mxu0
      %434 = vmatprep.mubr.f32.mxu0 0.0
      %435 = vmatmul.mubr.f32.gmra.mrb[0].mxu0 %v261
      %v436 = vpop.f32.mrb[0].mxu0
      %v437 = vadd.f32 0.0, %v436
      %v438 = vpop.f32.mrb[0].mxu0
      %439 = vmatprep.mubr.f32.mxu0 0.0
      %440 = vmatmul.mubr.f32.gmra.mrb[0].mxu0 %v264
      %v441 = vpop.f32.mrb[0].mxu0
      %v442 = vadd.f32 0.0, %v441
      %v443 = vpop.f32.mrb[0].mxu0
      %444 = vmatprep.mubr.f32.mxu0 0.0
      %445 = vmatmul.mubr.f32.gmra.mrb[0].mxu0 %v267
      %v446 = vpop.f32.mrb[0].mxu0
      %v447 = vadd.f32 0.0, %v446
      %v448 = vpop.f32.mrb[0].mxu0
      %449 = vmatprep.mubr.f32.mxu0 0.0
      %450 = vmatmul.mubr.f32.gmra.mrb[0].mxu0 %v270
      %v451 = vpop.f32.mrb[0].mxu0
      %v452 = vadd.f32 0.0, %v451
      %v453 = vpop.f32.mrb[0].mxu0
      %454 = vmatprep.mubr.f32.mxu0 0.0
      %455 = vmatmul.mubr.f32.gmra.mrb[0].mxu0 %v273
      %v456 = vpop.f32.mrb[0].mxu0
      %v457 = vadd.f32 0.0, %v456
      %v458 = vpop.f32.mrb[0].mxu0
      %459 = vmatprep.mubr.f32.mxu0 0.0
      %460 = vmatmul.mubr.f32.gmra.mrb[0].mxu0 %v276
      %v461 = vpop.f32.mrb[0].mxu0
      %v462 = vadd.f32 0.0, %v461
      %v463 = vpop.f32.mrb[0].mxu0
      %464 = vmatprep.mubr.f32.mxu0 0.0
      %465 = vmatmul.mubr.f32.gmra.mrb[0].mxu0 %v279
      %v466 = vpop.f32.mrb[0].mxu0
      %v467 = vadd.f32 0.0, %v466
      %v468 = vpop.f32.mrb[0].mxu0
      %469 = vmatprep.mubr.f32.mxu0 0.0
      %470 = vmatmul.mubr.f32.gmra.mrb[0].mxu0 %v282
      %v471 = vpop.f32.mrb[0].mxu0
      %v472 = vadd.f32 0.0, %v471
      %v473 = vpop.f32.mrb[0].mxu0
      %474 = vmatprep.mubr.f32.mxu0 0.0
      %475 = vmatmul.mubr.f32.gmra.mrb[0].mxu0 %v285
      %v476 = vpop.f32.mrb[0].mxu0
      %v477 = vadd.f32 0.0, %v476
      %v478 = vpop.f32.mrb[0].mxu0
      %479 = vmatprep.mubr.f32.mxu0 0.0
      %480 = vmatmul.mubr.f32.gmra.mrb[0].mxu0 %v288
      %v481 = vpop.f32.mrb[0].mxu0
      %v482 = vadd.f32 0.0, %v481
      %v483 = vpop.f32.mrb[0].mxu0
      %484 = vmatprep.mubr.f32.mxu0 0.0
      %485 = vmatmul.mubr.f32.gmra.mrb[0].mxu0 %v291
      %v486 = vpop.f32.mrb[0].mxu0
      %v487 = vadd.f32 0.0, %v486
      %v488 = vpop.f32.mrb[0].mxu0
      %489 = vmatprep.mubr.f32.mxu0 0.0
      %490 = vmatmul.mubr.f32.gmra.mrb[0].mxu0 %v294
      %v491 = vpop.f32.mrb[0].mxu0
      %v492 = vadd.f32 0.0, %v491
      %v493 = vpop.f32.mrb[0].mxu0
      %494 = vmatprep.mubr.f32.mxu0 0.0
      %495 = vmatmul.mubr.f32.gmra.mrb[0].mxu0 %v297
      %v496 = vpop.f32.mrb[0].mxu0
      %v497 = vadd.f32 0.0, %v496
      %v498 = vpop.f32.mrb[0].mxu0
      %499 = vmatprep.mubr.f32.mxu0 0.0
      %500 = vmatmul.mubr.f32.gmra.mrb[0].mxu0 %v300
      %v501 = vpop.f32.mrb[0].mxu0
      %v502 = vadd.f32 0.0, %v501
      %v503 = vpop.f32.mrb[0].mxu0
      %504 = vmatprep.mubr.f32.mxu0 0.0
      %505 = vmatmul.mubr.f32.gmra.mrb[0].mxu0 %v303
      %v506 = vpop.f32.mrb[0].mxu0
      %v507 = vadd.f32 0.0, %v506
      %v508 = vpop.f32.mrb[0].mxu0
      %509 = vmatprep.mubr.f32.mxu0 0.0
      %510 = vmatmul.mubr.f32.gmra.mrb[0].mxu0 %v306
      %v511 = vpop.f32.mrb[0].mxu0
      %v512 = vadd.f32 0.0, %v511
      %v513 = vpop.f32.mrb[0].mxu0
      %514 = vmatprep.mubr.f32.mxu0 0.0
      %515 = vmatmul.mubr.f32.gmra.mrb[0].mxu0 %v309
      %v516 = vpop.f32.mrb[0].mxu0
      %v517 = vadd.f32 0.0, %v516
      %v518 = vpop.f32.mrb[0].mxu0
      %519 = vmatprep.mubr.f32.mxu0 0.0
      %520 = vmatmul.mubr.f32.gmra.mrb[0].mxu0 %v312
      %v521 = vpop.f32.mrb[0].mxu0
      %v522 = vadd.f32 0.0, %v521
      %v523 = vpop.f32.mrb[0].mxu0
      %524 = vmatprep.mubr.f32.mxu0 0.0
      %525 = vmatmul.mubr.f32.gmra.mrb[0].mxu0 %v315
      %v526 = vpop.f32.mrb[0].mxu0
      %v527 = vadd.f32 0.0, %v526
      %v528 = vpop.f32.mrb[0].mxu0
      %529 = vmatprep.mubr.f32.mxu0 0.0
      %530 = vmatmul.mubr.f32.gmra.mrb[0].mxu0 %v318
      %v531 = vpop.f32.mrb[0].mxu0
      %v532 = vadd.f32 0.0, %v531
      %v533 = vpop.f32.mrb[0].mxu0
      %534 = vmatprep.mubr.f32.mxu0 0.0
      %535 = vmatmul.mubr.f32.gmra.mrb[0].mxu0 %v321
      %v536 = vpop.f32.mrb[0].mxu0
      %v537 = vadd.f32 0.0, %v536
      %v538 = vpop.f32.mrb[0].mxu0
      %539 = vmatprep.mubr.f32.mxu0 0.0
      %540 = vmatmul.mubr.f32.gmra.mrb[0].mxu0 %v324
      %v541 = vpop.f32.mrb[0].mxu0
      %v542 = vadd.f32 0.0, %v541
      %v543 = vpop.f32.mrb[0].mxu0
      %544 = vmatprep.mubr.f32.mxu0 0.0
      %545 = vmatmul.mubr.f32.gmra.mrb[0].mxu0 %v327
      %v546 = vpop.f32.mrb[0].mxu0
      %v547 = vadd.f32 0.0, %v546
      %v548 = vpop.f32.mrb[0].mxu0
      %549 = vmatprep.mubr.f32.mxu0 0.0
      %550 = vmatmul.mubr.f32.gmra.mrb[0].mxu0 %v330
      %v551 = vpop.f32.mrb[0].mxu0
      %v552 = vadd.f32 0.0, %v551
      %v553 = vpop.f32.mrb[0].mxu0
      %554 = vmatprep.mubr.f32.mxu0 0.0
      %555 = vmatmul.mubr.f32.gmra.mrb[0].mxu0 %v333
      %v556 = vpop.f32.mrb[0].mxu0
      %v557 = vadd.f32 0.0, %v556
      %v558 = vpop.f32.mrb[0].mxu0
      %559 = vdwg.mxu0
      %v560 = vld [vmem:[%s2] sm:$0xff]
      %v561 = vld [vmem:[%s2 + $0x8] sm:$0xff]
      %v562 = vld [vmem:[%s2 + $0x10] sm:$0xff]
      %v563 = vld [vmem:[%s2 + $0x18] sm:$0xff]
      %v564 = vld [vmem:[%s3] sm:$0x1]
      %v566 = vlaneseq
      %v567 = vshrl.u32 %v566, 7
      %v568 = vsub.s32 0, %v567
      %v569 = vrot.slane %v564, %v568
      %vm571 = vcmask 261120
      %v573 = vsel %vm571, %v402, 0
      %v576 = vsel %vm571, %v407, 0
      %v579 = vsel %vm571, %v412, 0
      %v582 = vsel %vm571, %v417, 0
      %v585 = vsel %vm571, %v422, 0
      %v588 = vsel %vm571, %v427, 0
      %v591 = vsel %vm571, %v432, 0
      %v594 = vsel %vm571, %v437, 0
      %v597 = vsel %vm571, %v442, 0
      %v600 = vsel %vm571, %v447, 0
      %v603 = vsel %vm571, %v452, 0
      %v606 = vsel %vm571, %v457, 0
      %v609 = vsel %vm571, %v462, 0
      %v612 = vsel %vm571, %v467, 0
      %v615 = vsel %vm571, %v472, 0
      %v618 = vsel %vm571, %v477, 0
      %v621 = vsel %vm571, %v482, 0
      %v624 = vsel %vm571, %v487, 0
      %v627 = vsel %vm571, %v492, 0
      %v630 = vsel %vm571, %v497, 0
      %v633 = vsel %vm571, %v502, 0
      %v636 = vsel %vm571, %v507, 0
      %v639 = vsel %vm571, %v512, 0
      %v642 = vsel %vm571, %v517, 0
      %v645 = vsel %vm571, %v522, 0
      %v648 = vsel %vm571, %v527, 0
      %v651 = vsel %vm571, %v532, 0
      %v654 = vsel %vm571, %v537, 0
      %v657 = vsel %vm571, %v542, 0
      %v660 = vsel %vm571, %v547, 0
      %v663 = vsel %vm571, %v552, 0
      %v666 = vsel %vm571, %v557, 0
      %668 = vmatprep.subr.mxu0 0.0
      %669 = vmatpush1.msra.mxu0 %v560
      %670 = vmatprep.subr.mxu0 0.0
      %671 = vmatpush1.msra.mxu0 %v561
      %672 = vmatprep.subr.mxu0 0.0
      %673 = vmatpush1.msra.mxu0 %v562
      %674 = vmatprep.subr.mxu0 0.0
      %675 = vmatpush1.msra.mxu0 %v563
      %676 = vmatprep.subr.mxu0 0.0
      %677 = vmatpush1.msra.mxu0 0.0
      %678 = vmatprep.subr.mxu0 0.0
      %679 = vmatpush1.msra.mxu0 0.0
      %680 = vmatprep.subr.mxu0 0.0
      %681 = vmatpush1.msra.mxu0 0.0
      %682 = vmatprep.subr.mxu0 0.0
      %683 = vmatpush1.msra.mxu0 0.0
      %684 = vmatprep.subr.mxu0 0.0
      %685 = vmatpush1.msra.mxu0 0.0
      %686 = vmatprep.subr.mxu0 0.0
      %687 = vmatpush1.msra.mxu0 0.0
      %688 = vmatprep.subr.mxu0 0.0
      %689 = vmatpush1.msra.mxu0 0.0
      %690 = vmatprep.subr.mxu0 0.0
      %691 = vmatpush1.msra.mxu0 0.0
      %692 = vmatprep.subr.mxu0 0.0
      %693 = vmatpush1.msra.mxu0 0.0
      %694 = vmatprep.subr.mxu0 0.0
      %695 = vmatpush1.msra.mxu0 0.0
      %696 = vmatprep.subr.mxu0 0.0
      %697 = vmatpush1.msra.mxu0 0.0
      %698 = vmatprep.subr.mxu0 0.0
      %699 = vmatpush1.msra.mxu0 0.0
      %700 = vmatprep.subr.mxu0 0.0
      %701 = vmatpush1.msra.mxu0 0.0
      %702 = vmatprep.subr.mxu0 0.0
      %703 = vmatpush1.msra.mxu0 0.0
      %704 = vmatprep.subr.mxu0 0.0
      %705 = vmatpush1.msra.mxu0 0.0
      %706 = vmatprep.subr.mxu0 0.0
      %707 = vmatpush1.msra.mxu0 0.0
      %708 = vmatprep.subr.mxu0 0.0
      %709 = vmatpush1.msra.mxu0 0.0
      %710 = vmatprep.subr.mxu0 0.0
      %711 = vmatpush1.msra.mxu0 0.0
      %712 = vmatprep.subr.mxu0 0.0
      %713 = vmatpush1.msra.mxu0 0.0
      %714 = vmatprep.subr.mxu0 0.0
      %715 = vmatpush1.msra.mxu0 0.0
      %716 = vmatprep.subr.mxu0 0.0
      %717 = vmatpush1.msra.mxu0 0.0
      %718 = vmatprep.subr.mxu0 0.0
      %719 = vmatpush1.msra.mxu0 0.0
      %720 = vmatprep.subr.mxu0 0.0
      %721 = vmatpush1.msra.mxu0 0.0
      %722 = vmatprep.subr.mxu0 0.0
      %723 = vmatpush1.msra.mxu0 0.0
      %724 = vmatprep.subr.mxu0 0.0
      %725 = vmatpush1.msra.mxu0 0.0
      %726 = vmatprep.subr.mxu0 0.0
      %727 = vmatpush1.msra.mxu0 0.0
      %728 = vmatprep.subr.mxu0 0.0
      %729 = vmatpush1.msra.mxu0 0.0
      %730 = vmatprep.subr.mxu0 0.0
      %731 = vmatpush1.msra.mxu0 0.0
      %732 = vmatprep.mubr.f32.mxu0 0.0
      %733 = vmatmul.mubr.f32.gmra.mrb[0].mxu0 %v573
      %v734 = vpop.f32.mrb[0].mxu0
      %v735 = vadd.f32 %v569, %v734
      %v736 = vpop.f32.mrb[0].mxu0
      %737 = vmatprep.mubr.f32.mxu0 0.0
      %738 = vmatmul.mubr.f32.gmra.mrb[0].mxu0 %v576
      %v739 = vpop.f32.mrb[0].mxu0
      %v740 = vadd.f32 %v569, %v739
      %v741 = vpop.f32.mrb[0].mxu0
      %742 = vmatprep.mubr.f32.mxu0 0.0
      %743 = vmatmul.mubr.f32.gmra.mrb[0].mxu0 %v579
      %v744 = vpop.f32.mrb[0].mxu0
      %v745 = vadd.f32 %v569, %v744
      %v746 = vpop.f32.mrb[0].mxu0
      %747 = vmatprep.mubr.f32.mxu0 0.0
      %748 = vmatmul.mubr.f32.gmra.mrb[0].mxu0 %v582
      %v749 = vpop.f32.mrb[0].mxu0
      %v750 = vadd.f32 %v569, %v749
      %v751 = vpop.f32.mrb[0].mxu0
      %752 = vmatprep.mubr.f32.mxu0 0.0
      %753 = vmatmul.mubr.f32.gmra.mrb[0].mxu0 %v585
      %v754 = vpop.f32.mrb[0].mxu0
      %v755 = vadd.f32 %v569, %v754
      %v756 = vpop.f32.mrb[0].mxu0
      %757 = vmatprep.mubr.f32.mxu0 0.0
      %758 = vmatmul.mubr.f32.gmra.mrb[0].mxu0 %v588
      %v759 = vpop.f32.mrb[0].mxu0
      %v760 = vadd.f32 %v569, %v759
      %v761 = vpop.f32.mrb[0].mxu0
      %762 = vmatprep.mubr.f32.mxu0 0.0
      %763 = vmatmul.mubr.f32.gmra.mrb[0].mxu0 %v591
      %v764 = vpop.f32.mrb[0].mxu0
      %v765 = vadd.f32 %v569, %v764
      %v766 = vpop.f32.mrb[0].mxu0
      %767 = vmatprep.mubr.f32.mxu0 0.0
      %768 = vmatmul.mubr.f32.gmra.mrb[0].mxu0 %v594
      %v769 = vpop.f32.mrb[0].mxu0
      %v770 = vadd.f32 %v569, %v769
      %v771 = vpop.f32.mrb[0].mxu0
      %772 = vmatprep.mubr.f32.mxu0 0.0
      %773 = vmatmul.mubr.f32.gmra.mrb[0].mxu0 %v597
      %v774 = vpop.f32.mrb[0].mxu0
      %v775 = vadd.f32 %v569, %v774
      %v776 = vpop.f32.mrb[0].mxu0
      %777 = vmatprep.mubr.f32.mxu0 0.0
      %778 = vmatmul.mubr.f32.gmra.mrb[0].mxu0 %v600
      %v779 = vpop.f32.mrb[0].mxu0
      %v780 = vadd.f32 %v569, %v779
      %v781 = vpop.f32.mrb[0].mxu0
      %782 = vmatprep.mubr.f32.mxu0 0.0
      %783 = vmatmul.mubr.f32.gmra.mrb[0].mxu0 %v603
      %v784 = vpop.f32.mrb[0].mxu0
      %v785 = vadd.f32 %v569, %v784
      %v786 = vpop.f32.mrb[0].mxu0
      %787 = vmatprep.mubr.f32.mxu0 0.0
      %788 = vmatmul.mubr.f32.gmra.mrb[0].mxu0 %v606
      %v789 = vpop.f32.mrb[0].mxu0
      %v790 = vadd.f32 %v569, %v789
      %v791 = vpop.f32.mrb[0].mxu0
      %792 = vmatprep.mubr.f32.mxu0 0.0
      %793 = vmatmul.mubr.f32.gmra.mrb[0].mxu0 %v609
      %v794 = vpop.f32.mrb[0].mxu0
      %v795 = vadd.f32 %v569, %v794
      %v796 = vpop.f32.mrb[0].mxu0
      %797 = vmatprep.mubr.f32.mxu0 0.0
      %798 = vmatmul.mubr.f32.gmra.mrb[0].mxu0 %v612
      %v799 = vpop.f32.mrb[0].mxu0
      %v800 = vadd.f32 %v569, %v799
      %v801 = vpop.f32.mrb[0].mxu0
      %802 = vmatprep.mubr.f32.mxu0 0.0
      %803 = vmatmul.mubr.f32.gmra.mrb[0].mxu0 %v615
      %v804 = vpop.f32.mrb[0].mxu0
      %v805 = vadd.f32 %v569, %v804
      %v806 = vpop.f32.mrb[0].mxu0
      %807 = vmatprep.mubr.f32.mxu0 0.0
      %808 = vmatmul.mubr.f32.gmra.mrb[0].mxu0 %v618
      %v809 = vpop.f32.mrb[0].mxu0
      %v810 = vadd.f32 %v569, %v809
      %v811 = vpop.f32.mrb[0].mxu0
      %812 = vmatprep.mubr.f32.mxu0 0.0
      %813 = vmatmul.mubr.f32.gmra.mrb[0].mxu0 %v621
      %v814 = vpop.f32.mrb[0].mxu0
      %v815 = vadd.f32 %v569, %v814
      %v816 = vpop.f32.mrb[0].mxu0
      %817 = vmatprep.mubr.f32.mxu0 0.0
      %818 = vmatmul.mubr.f32.gmra.mrb[0].mxu0 %v624
      %v819 = vpop.f32.mrb[0].mxu0
      %v820 = vadd.f32 %v569, %v819
      %v821 = vpop.f32.mrb[0].mxu0
      %822 = vmatprep.mubr.f32.mxu0 0.0
      %823 = vmatmul.mubr.f32.gmra.mrb[0].mxu0 %v627
      %v824 = vpop.f32.mrb[0].mxu0
      %v825 = vadd.f32 %v569, %v824
      %v826 = vpop.f32.mrb[0].mxu0
      %827 = vmatprep.mubr.f32.mxu0 0.0
      %828 = vmatmul.mubr.f32.gmra.mrb[0].mxu0 %v630
      %v829 = vpop.f32.mrb[0].mxu0
      %v830 = vadd.f32 %v569, %v829
      %v831 = vpop.f32.mrb[0].mxu0
      %832 = vmatprep.mubr.f32.mxu0 0.0
      %833 = vmatmul.mubr.f32.gmra.mrb[0].mxu0 %v633
      %v834 = vpop.f32.mrb[0].mxu0
      %v835 = vadd.f32 %v569, %v834
      %v836 = vpop.f32.mrb[0].mxu0
      %837 = vmatprep.mubr.f32.mxu0 0.0
      %838 = vmatmul.mubr.f32.gmra.mrb[0].mxu0 %v636
      %v839 = vpop.f32.mrb[0].mxu0
      %v840 = vadd.f32 %v569, %v839
      %v841 = vpop.f32.mrb[0].mxu0
      %842 = vmatprep.mubr.f32.mxu0 0.0
      %843 = vmatmul.mubr.f32.gmra.mrb[0].mxu0 %v639
      %v844 = vpop.f32.mrb[0].mxu0
      %v845 = vadd.f32 %v569, %v844
      %v846 = vpop.f32.mrb[0].mxu0
      %847 = vmatprep.mubr.f32.mxu0 0.0
      %848 = vmatmul.mubr.f32.gmra.mrb[0].mxu0 %v642
      %v849 = vpop.f32.mrb[0].mxu0
      %v850 = vadd.f32 %v569, %v849
      %v851 = vpop.f32.mrb[0].mxu0
      %852 = vmatprep.mubr.f32.mxu0 0.0
      %853 = vmatmul.mubr.f32.gmra.mrb[0].mxu0 %v645
      %v854 = vpop.f32.mrb[0].mxu0
      %v855 = vadd.f32 %v569, %v854
      %v856 = vpop.f32.mrb[0].mxu0
      %857 = vmatprep.mubr.f32.mxu0 0.0
      %858 = vmatmul.mubr.f32.gmra.mrb[0].mxu0 %v648
      %v859 = vpop.f32.mrb[0].mxu0
      %v860 = vadd.f32 %v569, %v859
      %v861 = vpop.f32.mrb[0].mxu0
      %862 = vmatprep.mubr.f32.mxu0 0.0
      %863 = vmatmul.mubr.f32.gmra.mrb[0].mxu0 %v651
      %v864 = vpop.f32.mrb[0].mxu0
      %v865 = vadd.f32 %v569, %v864
      %v866 = vpop.f32.mrb[0].mxu0
      %867 = vmatprep.mubr.f32.mxu0 0.0
      %868 = vmatmul.mubr.f32.gmra.mrb[0].mxu0 %v654
      %v869 = vpop.f32.mrb[0].mxu0
      %v870 = vadd.f32 %v569, %v869
      %v871 = vpop.f32.mrb[0].mxu0
      %872 = vmatprep.mubr.f32.mxu0 0.0
      %873 = vmatmul.mubr.f32.gmra.mrb[0].mxu0 %v657
      %v874 = vpop.f32.mrb[0].mxu0
      %v875 = vadd.f32 %v569, %v874
      %v876 = vpop.f32.mrb[0].mxu0
      %877 = vmatprep.mubr.f32.mxu0 0.0
      %878 = vmatmul.mubr.f32.gmra.mrb[0].mxu0 %v660
      %v879 = vpop.f32.mrb[0].mxu0
      %v880 = vadd.f32 %v569, %v879
      %v881 = vpop.f32.mrb[0].mxu0
      %882 = vmatprep.mubr.f32.mxu0 0.0
      %883 = vmatmul.mubr.f32.gmra.mrb[0].mxu0 %v663
      %v884 = vpop.f32.mrb[0].mxu0
      %v885 = vadd.f32 %v569, %v884
      %v886 = vpop.f32.mrb[0].mxu0
      %887 = vmatprep.mubr.f32.mxu0 0.0
      %888 = vmatmul.mubr.f32.gmra.mrb[0].mxu0 %v666
      %v889 = vpop.f32.mrb[0].mxu0
      %v890 = vadd.f32 %v569, %v889
      %v891 = vpop.f32.mrb[0].mxu0
      %892 = vdwg.mxu0
      %893 = vst.msk [vmem:[%s197] sm:$0xff] %vm238, %v735
      %894 = vst.msk [vmem:[%s197 + $0x8] sm:$0xff] %vm238, %v740
      %895 = vst.msk [vmem:[%s197 + $0x10] sm:$0xff] %vm238, %v745
      %896 = vst.msk [vmem:[%s197 + $0x18] sm:$0xff] %vm238, %v750
      %897 = vst.msk [vmem:[%s197 + $0x20] sm:$0xff] %vm238, %v755
      %898 = vst.msk [vmem:[%s197 + $0x28] sm:$0xff] %vm238, %v760
      %899 = vst.msk [vmem:[%s197 + $0x30] sm:$0xff] %vm238, %v765
      %900 = vst.msk [vmem:[%s197 + $0x38] sm:$0xff] %vm238, %v770
      %901 = vst.msk [vmem:[%s197 + $0x40] sm:$0xff] %vm238, %v775
      %902 = vst.msk [vmem:[%s197 + $0x48] sm:$0xff] %vm238, %v780
      %903 = vst.msk [vmem:[%s197 + $0x50] sm:$0xff] %vm238, %v785
      %904 = vst.msk [vmem:[%s197 + $0x58] sm:$0xff] %vm238, %v790
      %905 = vst.msk [vmem:[%s197 + $0x60] sm:$0xff] %vm238, %v795
      %906 = vst.msk [vmem:[%s197 + $0x68] sm:$0xff] %vm238, %v800
      %907 = vst.msk [vmem:[%s197 + $0x70] sm:$0xff] %vm238, %v805
      %908 = vst.msk [vmem:[%s197 + $0x78] sm:$0xff] %vm238, %v810
      %909 = vst.msk [vmem:[%s197 + $0x80] sm:$0xff] %vm238, %v815
      %910 = vst.msk [vmem:[%s197 + $0x88] sm:$0xff] %vm238, %v820
      %911 = vst.msk [vmem:[%s197 + $0x90] sm:$0xff] %vm238, %v825
      %912 = vst.msk [vmem:[%s197 + $0x98] sm:$0xff] %vm238, %v830
      %913 = vst.msk [vmem:[%s197 + $0xa0] sm:$0xff] %vm238, %v835
      %914 = vst.msk [vmem:[%s197 + $0xa8] sm:$0xff] %vm238, %v840
      %915 = vst.msk [vmem:[%s197 + $0xb0] sm:$0xff] %vm238, %v845
      %916 = vst.msk [vmem:[%s197 + $0xb8] sm:$0xff] %vm238, %v850
      %917 = vst.msk [vmem:[%s197 + $0xc0] sm:$0xff] %vm238, %v855
      %918 = vst.msk [vmem:[%s197 + $0xc8] sm:$0xff] %vm238, %v860
      %919 = vst.msk [vmem:[%s197 + $0xd0] sm:$0xff] %vm238, %v865
      %920 = vst.msk [vmem:[%s197 + $0xd8] sm:$0xff] %vm238, %v870
      %921 = vst.msk [vmem:[%s197 + $0xe0] sm:$0xff] %vm238, %v875
      %922 = vst.msk [vmem:[%s197 + $0xe8] sm:$0xff] %vm238, %v880
      %923 = vst.msk [vmem:[%s197 + $0xf0] sm:$0xff] %vm238, %v885
      %924 = vst.msk [vmem:[%s197 + $0xf8] sm:$0xff] %vm238, %v890
      %p925 = scmp.lt.s32.totalorder %s15, 1
      %s926 = scalar_select %p925, %s15, 1
      %s927 = smul.addr %s926, 32
      %s928 = smul.addr %s927, 8
      %s929 = scalar_lea.vmem %s4, %s928
      // Predicated region
      $region37: #{tpu_custom_call.1} parent=35 // pred_check
        %p930 = pneg %p122
      $region38: #{tpu_custom_call.1} parent=35 // pred_check_branch
        %932 = sbr.rel (%p930) target = $region40
      $region39: #{tpu_custom_call.1} parent=35 // pred_region
        _
      $region40: #{tpu_custom_call.1} parent=35 // pred_fallthru
        _
    $region36: #{tpu_custom_call.1} parent=5 // pred_fallthru
      _
    %p933 = scmp.le.s32.totalorder 2, %s10
    // Predicated region
    $region41: #{tpu_custom_call.1} parent=5 // pred_check
      %p934 = pneg %p933
    $region42: #{tpu_custom_call.1} parent=5 // pred_check_branch
      %936 = sbr.rel (%p934) target = $region44
    $region43: #{tpu_custom_call.1} parent=5 // pred_region
      %s937 = ssub.s32 %s10, 2
      // Predicated region
      $region45: #{tpu_custom_call.1} parent=43 // pred_check
        %p938 = pneg %p128
      $region46: #{tpu_custom_call.1} parent=43 // pred_check_branch
        %940 = sbr.rel (%p938) target = $region48
      $region47: #{tpu_custom_call.1} parent=43 // pred_region
        %p941 = scmp.lt.s32.totalorder %s16, 1
        %s942 = scalar_select %p941, %s16, 1
        %s943 = smul.addr %s942, 32
        %s944 = smul.addr %s943, 8
        %s945 = scalar_lea.vmem %s4, %s944
      $region48: #{tpu_custom_call.1} parent=43 // pred_fallthru
        _
    $region44: #{tpu_custom_call.1} parent=5 // pred_fallthru
      _
  $region6: #{tpu_custom_call.1} parent=0 // loop_footer
    %s14 = sadd.s32 1, %s10
  $region7: #{tpu_custom_call.1} parent=0 // loop_footer_branch
    %9 = sbr.rel target = $region3
  $region8: #{tpu_custom_call.1} parent=0 // loop_exit
    _

</llo_original>
